<compile_context>
chip_gen: v6e
topology: v6e:2x2x1
jax: 0.10.0
libtpu: 0.0.40
codegen_flags: <defaults>
</compile_context>

<pallas_src>
import jax
import jax.numpy as jnp
from jax import lax
from jax.experimental import pallas as pl
from jax.experimental.pallas import tpu as pltpu


# ---------------------------------------------------------------------------
# Hierarchy configuration (static / compile-time, mirrors the torch __init__)
# ---------------------------------------------------------------------------
HIERARCHY = {
    "class1": (None, 2),
    "class2": ("class1.1", 2),
    "class7": ("class1.2", 3),
    "class8": (["class1.1", "class7.3"], 2),
}
CLASS_ORDER = list(HIERARCHY.keys())
CLASS_SIZES = [HIERARCHY[c][1] for c in CLASS_ORDER]
TOTAL_OUT = sum(CLASS_SIZES)  # = 9

_OFFS = {}
_o = 0
for _c, _n in zip(CLASS_ORDER, CLASS_SIZES):
    _OFFS[_c] = (_o, _o + _n)
    _o += _n


# ---------------------------------------------------------------------------
# Pallas kernel: fused matmul + hierarchical constrained activations
# ---------------------------------------------------------------------------
def constrained_output_kernel(x_ref, w_ref, b_ref, o_ref):
    # Native-dtype operands straight into the MXU; accumulate in f32.
    logits = jnp.dot(x_ref[...], w_ref[...], preferred_element_type=jnp.float32)
    logits = logits + b_ref[...].astype(jnp.float32)           # [tb, 9] f32

    # Segment masks built at (1, 9) and broadcast (cheap vs (tb, 9) iota+compares).
    col = lax.broadcasted_iota(jnp.int32, (1, TOTAL_OUT), 1)   # column ids 0..8

    # Sigmoid across the full block (only cols 0:2 survive as the root output,
    # but full-width is cheaper than narrow slices).
    sig = jax.nn.sigmoid(logits)
    out = sig

    # Parent probabilities (the only narrow lane slices kept).
    p1_1 = sig[:, 0:1]   # class1.1
    p1_2 = sig[:, 1:2]   # class1.2

    def seg_softmax(s, e):
        """Masked softmax over columns [s, e) of the full-width logits block."""
        mask = jnp.logical_and(col >= s, col < e)               # (1, 9), broadcasts
        z = jnp.where(mask, logits, -jnp.inf)
        m = jnp.max(z, axis=1, keepdims=True)
        # Mask the exponent argument too: out-of-segment columns see exp(0), never
        # exp(+large), so this stays finite even if refactored to mask * exp(...).
        ez = jnp.where(mask, jnp.exp(jnp.where(mask, logits - m, 0.0)), 0.0)
        denom = jnp.sum(ez, axis=1, keepdims=True)
        # Exact reciprocal: negligible cost (hidden under the x DMA) and keeps each
        # child segment summing exactly to its clamped parent probability.
        return ez * pl.reciprocal(denom, approx=False), mask

    # class2: parent class1.1
    s2, e2 = _OFFS["class2"]
    sm2, m2 = seg_softmax(s2, e2)
    out = jnp.where(m2, sm2 * jnp.minimum(p1_1, 1.0), out)

    # class7: parent class1.2
    s7, e7 = _OFFS["class7"]
    sm7, m7 = seg_softmax(s7, e7)
    out = jnp.where(m7, sm7 * jnp.minimum(p1_2, 1.0), out)

    # class8: parents class1.1 + (already constrained) class7.3
    p7_3 = out[:, e7 - 1:e7]
    s8, e8 = _OFFS["class8"]
    sm8, m8 = seg_softmax(s8, e8)
    out = jnp.where(m8, sm8 * jnp.minimum(p1_1 + p7_3, 1.0), out)

    # Single store of the full [tb, 9] block.
    o_ref[...] = out.astype(o_ref.dtype)


# ---------------------------------------------------------------------------
# Per-generation sizing helpers
# ---------------------------------------------------------------------------
def _round_up(v, m):
    return ((v + m - 1) // m) * m


def _hw_vmem_bytes():
    """Physical VMEM per TensorCore; conservative 64 MiB fallback (v7x floor)."""
    try:
        info = pltpu.get_tpu_info()
        cap = int(getattr(info, "vmem_capacity_bytes"))
        if cap > 0:
            return cap
    except Exception:
        pass
    return 64 << 20


def _budgets():
    """(x double-buffer budget, target tile rows, vmem_limit_bytes) per generation."""
    vmem_phys = _hw_vmem_bytes()
    if vmem_phys >= (96 << 20):           # v5e / v6e: 128 MiB physical
        return (80 << 20), 1024, (110 << 20)
    # v7x: 64 MiB physical per core; faster HBM => bigger tiles to amortize
    # the ~0.35 us/grid-step overhead, but a tighter VMEM ceiling.
    return (40 << 20), 2048, (56 << 20)


def _choose_tile_b(B, F, x_bytes, w_bytes, out_bytes):
    """Sublane-multiple batch tile; cdiv grid, so tb need NOT divide B."""
    min_sub = {4: 8, 2: 16, 1: 32}.get(x_bytes, 8)
    if B <= min_sub:
        return B  # single full-extent block (legal: equals the array dim)

    x_budget, target_rows, _ = _budgets()

    # Resident W block is lane-padded to (F_pad8, 128) in VMEM; reserve it (x2 for
    # conservative double-buffering) plus slack for bias / epilogue temporaries.
    f_pad = _round_up(F, 8)
    reserved = 2 * f_pad * 128 * w_bytes + (4 << 20)
    # Per-row VMEM cost: double-buffered x rows + lane-padded double-buffered output.
    per_row = 2 * F * x_bytes + 2 * 128 * out_bytes
    avail = max(x_budget - reserved, per_row * min_sub)
    cap = max(min_sub, (avail // per_row) // min_sub * min_sub)

    tb = min(target_rows, cap)

    # Keep the grid at >= 4 steps (>= 2 for small B) so input pipelining and the
    # second v7x TensorCore (batch axis is "parallel") both engage.
    if B >= 4 * min_sub:
        tb = min(tb, _round_up(-(-B // 4), min_sub))
    else:
        tb = min(tb, _round_up(-(-B // 2), min_sub))

    tb = max(min_sub, (tb // min_sub) * min_sub)
    return tb


# ---------------------------------------------------------------------------
# Wrapper
# ---------------------------------------------------------------------------
def constrained_output_layer(x, w, b, *, tile_b=None, out_dtype=jnp.float32):
    """Fused ConstrainedOutputLayer forward.

    x: [B, F] (f32 or bf16 -- bf16 halves the dominant HBM read stream),
    w: [F, 9] fused weight, b: [1, 9] fused bias.  Returns [B, 9] probabilities
    (f32 by default; output write traffic is negligible).
    """
    B, F = x.shape
    assert w.shape == (F, TOTAL_OUT)
    assert b.shape == (1, TOTAL_OUT)

    x_bytes = jnp.dtype(x.dtype).itemsize
    w_bytes = jnp.dtype(w.dtype).itemsize
    out_bytes = jnp.dtype(out_dtype).itemsize

    if tile_b is None:
        tb = _choose_tile_b(B, F, x_bytes, w_bytes, out_bytes)
    else:
        tb = int(tile_b)
        min_sub = {4: 8, 2: 16, 1: 32}.get(x_bytes, 8)
        assert tb == B or tb % min_sub == 0, "tile_b must be a sublane multiple or == B"

    _, _, vmem_limit = _budgets()
    grid_b = pl.cdiv(B, tb)

    cost = pl.CostEstimate(
        flops=2 * B * F * TOTAL_OUT,
        transcendentals=19 * B,  # ~9 sigmoid-exps + 7 softmax-exps + 3 recips per row
        bytes_accessed=(B * F * x_bytes
                        + F * TOTAL_OUT * w_bytes
                        + TOTAL_OUT * jnp.dtype(b.dtype).itemsize
                        + B * TOTAL_OUT * out_bytes),
    )

    return pl.pallas_call(
        constrained_output_kernel,
        out_shape=jax.ShapeDtypeStruct((B, TOTAL_OUT), out_dtype),
        grid_spec=pltpu.PrefetchScalarGridSpec(
            num_scalar_prefetch=0,
            grid=(grid_b,),
            in_specs=[
                pl.BlockSpec((tb, F), lambda i: (i, 0)),            # streamed x tile
                pl.BlockSpec((F, TOTAL_OUT), lambda i: (0, 0)),     # W: grid-invariant (resident)
                pl.BlockSpec((1, TOTAL_OUT), lambda i: (0, 0)),     # b: grid-invariant (resident)
            ],
            out_specs=pl.BlockSpec((tb, TOTAL_OUT), lambda i: (i, 0)),
        ),
        compiler_params=pltpu.CompilerParams(
            dimension_semantics=("parallel",),   # megacore-shards the batch axis (v7x)
            vmem_limit_bytes=vmem_limit,         # per-generation scoped-VMEM limit
        ),
        cost_estimate=cost,
    )(x, w, b)


# ---------------------------------------------------------------------------
# Pure-JAX reference (mirrors the PyTorch forward exactly) for verification
# ---------------------------------------------------------------------------
def reference_forward(x, w, b):
    logits = x @ w + b
    outputs = {}
    for c in CLASS_ORDER:
        s, e = _OFFS[c]
        lz = logits[:, s:e]
        parents, _ = HIERARCHY[c]
        outputs[c] = jax.nn.sigmoid(lz) if parents is None else lz
    for c in CLASS_ORDER:
        parents, _ = HIERARCHY[c]
        if parents is None:
            continue
        if isinstance(parents, str):
            parents = [parents]
        pps = []
        for p in parents:
            pname, psub = p.split(".")
            psub = int(psub) - 1
            pps.append(outputs[pname][:, psub:psub + 1])
        joint = jnp.minimum(sum(pps), 1.0)
        outputs[c] = jax.nn.softmax(outputs[c], axis=1) * joint
    return jnp.concatenate([outputs[c] for c in CLASS_ORDER], axis=1)


if __name__ == "__main__":
    key = jax.random.PRNGKey(0)
    kx, kw, kb = jax.random.split(key, 3)

    # ---- f32 check (PyTorch-default dtype), multi-step grid ----------------
    B, F = 16, 32
    x = jax.random.normal(kx, (B, F), dtype=jnp.float32)
    w = jax.random.normal(kw, (F, TOTAL_OUT), dtype=jnp.float32) * (1.0 / jnp.sqrt(F))
    b = jax.random.normal(kb, (1, TOTAL_OUT), dtype=jnp.float32) * 0.1

    out = jax.block_until_ready(constrained_output_layer(x, w, b))
    ref = reference_forward(x, w, b)
    assert out.shape == (B, TOTAL_OUT)
    assert jnp.allclose(out, ref, atol=5e-3, rtol=5e-3), (
        f"f32 max abs diff {jnp.max(jnp.abs(out - ref))}"
    )

    # ---- ragged batch (exercises the cdiv grid / partial last tile) --------
    B3 = 22   # not a multiple of the sublane pack
    x3 = jax.random.normal(kx, (B3, F), dtype=jnp.float32)
    out3 = jax.block_until_ready(constrained_output_layer(x3, w, b))
    ref3 = reference_forward(x3, w, b)
    assert out3.shape == (B3, TOTAL_OUT)
    assert jnp.allclose(out3, ref3, atol=5e-3, rtol=5e-3), (
        f"ragged f32 max abs diff {jnp.max(jnp.abs(out3 - ref3))}"
    )

    # ---- bf16 streaming check (half the HBM traffic for x), f32 output -----
    B2 = 32
    x2 = jax.random.normal(kx, (B2, F), dtype=jnp.float32).astype(jnp.bfloat16)
    w2 = w.astype(jnp.bfloat16)
    b2 = b.astype(jnp.bfloat16)
    out2 = jax.block_until_ready(constrained_output_layer(x2, w2, b2))
    ref2 = reference_forward(x2.astype(jnp.float32), w2.astype(jnp.float32),
                             b2.astype(jnp.float32))
    assert out2.shape == (B2, TOTAL_OUT)
    assert out2.dtype == jnp.float32
    assert jnp.allclose(out2, ref2, atol=5e-2, rtol=5e-2), (
        f"bf16 max abs diff {jnp.max(jnp.abs(out2 - ref2))}"
    )

    print("KERNEL_OK")
</pallas_src>

<mosaic_0001>
module attributes {stable_mosaic.version = 11 : i64} {
  func.func @constrained_output_kernel(%arg0: i32, %arg1: memref<8x32xf32, #tpu.memory_space<vmem>>, %arg2: memref<32x9xf32, #tpu.memory_space<vmem>>, %arg3: memref<1x9xf32, #tpu.memory_space<vmem>>, %arg4: memref<8x9xf32, #tpu.memory_space<vmem>>) attributes {dimension_semantics = [#tpu.dimension_semantics<parallel>], iteration_bounds = array<i64: 2>, scalar_prefetch = 0 : i64, scratch_operands = 0 : i64, tpu.core_type = #tpu.core_type<tc>, window_params = [{transform_indices = @transform_0, window_bounds = array<i64: 8, 32>}, {pipeline_mode = #tpu.pipeline_mode<synchronous>, transform_indices = @transform_1, window_bounds = array<i64: 32, 9>}, {pipeline_mode = #tpu.pipeline_mode<synchronous>, transform_indices = @transform_2, window_bounds = array<i64: 1, 9>}, {transform_indices = @transform_3, window_bounds = array<i64: 8, 9>}]} {
    %c0 = arith.constant 0 : index
    %c0_0 = arith.constant 0 : index
    %0 = vector.load %arg1[%c0, %c0_0] : memref<8x32xf32, #tpu.memory_space<vmem>>, vector<8x32xf32>
    %c0_1 = arith.constant 0 : index
    %c0_2 = arith.constant 0 : index
    %1 = vector.load %arg2[%c0_1, %c0_2] : memref<32x9xf32, #tpu.memory_space<vmem>>, vector<32x9xf32>
    %cst = arith.constant dense<0.000000e+00> : vector<8x9xf32>
    %2 = tpu.matmul %0, %1, %cst {dimension_numbers = #tpu.dot_dimension_numbers<[1], [0], [0], [1], [0, 0, 1, 1], [], []>} : vector<8x32xf32>, vector<32x9xf32>, vector<8x9xf32> -> vector<8x9xf32>
    %c0_3 = arith.constant 0 : index
    %c0_4 = arith.constant 0 : index
    %3 = vector.load %arg3[%c0_3, %c0_4] : memref<1x9xf32, #tpu.memory_space<vmem>>, vector<1x9xf32>
    %4 = vector.broadcast %3 : vector<1x9xf32> to vector<8x9xf32>
    %5 = arith.addf %2, %4 : vector<8x9xf32>
    %6 = tpu.iota {dimensions = array<i32: 1>} : vector<1x9xi32>
    %7 = arith.negf %5 : vector<8x9xf32>
    %8 = math.exp %7 : vector<8x9xf32>
    %cst_5 = arith.constant 1.000000e+00 : f32
    %9 = vector.broadcast %cst_5 : f32 to vector<8x9xf32>
    %10 = arith.addf %9, %8 : vector<8x9xf32>
    %11 = arith.divf %9, %10 : vector<8x9xf32>
    %12 = vector.extract_strided_slice %11 {offsets = [0, 0], sizes = [8, 1], strides = [1, 1]} : vector<8x9xf32> to vector<8x1xf32>
    %13 = vector.extract_strided_slice %11 {offsets = [0, 1], sizes = [8, 1], strides = [1, 1]} : vector<8x9xf32> to vector<8x1xf32>
    %c2_i32 = arith.constant 2 : i32
    %14 = vector.broadcast %c2_i32 : i32 to vector<1x9xi32>
    %15 = arith.cmpi sge, %6, %14 : vector<1x9xi32>
    %c4_i32 = arith.constant 4 : i32
    %16 = vector.broadcast %c4_i32 : i32 to vector<1x9xi32>
    %17 = arith.cmpi slt, %6, %16 : vector<1x9xi32>
    %18 = arith.andi %15, %17 : vector<1x9xi1>
    %cst_6 = arith.constant 0xFF800000 : f32
    %19 = vector.shape_cast %18 : vector<1x9xi1> to vector<1x9xi1>
    %20 = vector.broadcast %19 : vector<1x9xi1> to vector<8x9xi1>
    %21 = vector.broadcast %cst_6 : f32 to vector<8x9xf32>
    %22 = arith.select %20, %5, %21 : vector<8x9xi1>, vector<8x9xf32>
    %cst_7 = arith.constant dense<0xFF800000> : vector<8xf32>
    %23 = vector.multi_reduction <maximumf>, %22, %cst_7 [1] : vector<8x9xf32> to vector<8xf32>
    %24 = vector.shape_cast %23 : vector<8xf32> to vector<8x1xf32>
    %25 = vector.broadcast %24 : vector<8x1xf32> to vector<8x9xf32>
    %26 = arith.subf %5, %25 : vector<8x9xf32>
    %cst_8 = arith.constant 0.000000e+00 : f32
    %27 = vector.shape_cast %18 : vector<1x9xi1> to vector<1x9xi1>
    %28 = vector.broadcast %27 : vector<1x9xi1> to vector<8x9xi1>
    %29 = vector.broadcast %cst_8 : f32 to vector<8x9xf32>
    %30 = arith.select %28, %26, %29 : vector<8x9xi1>, vector<8x9xf32>
    %31 = math.exp %30 : vector<8x9xf32>
    %cst_9 = arith.constant 0.000000e+00 : f32
    %32 = vector.shape_cast %18 : vector<1x9xi1> to vector<1x9xi1>
    %33 = vector.broadcast %32 : vector<1x9xi1> to vector<8x9xi1>
    %34 = vector.broadcast %cst_9 : f32 to vector<8x9xf32>
    %35 = arith.select %33, %31, %34 : vector<8x9xi1>, vector<8x9xf32>
    %cst_10 = arith.constant dense<0.000000e+00> : vector<8xf32>
    %36 = vector.multi_reduction <add>, %35, %cst_10 [1] : vector<8x9xf32> to vector<8xf32>
    %37 = vector.shape_cast %36 : vector<8xf32> to vector<8x1xf32>
    %38 = tpu.reciprocal %37 : vector<8x1xf32> -> vector<8x1xf32>
    %39 = vector.broadcast %38 : vector<8x1xf32> to vector<8x9xf32>
    %40 = arith.mulf %35, %39 : vector<8x9xf32>
    %cst_11 = arith.constant 1.000000e+00 : f32
    %41 = vector.broadcast %cst_11 : f32 to vector<8x1xf32>
    %42 = arith.minimumf %12, %41 : vector<8x1xf32>
    %43 = vector.broadcast %42 : vector<8x1xf32> to vector<8x9xf32>
    %44 = arith.mulf %40, %43 : vector<8x9xf32>
    %45 = vector.shape_cast %18 : vector<1x9xi1> to vector<1x9xi1>
    %46 = vector.broadcast %45 : vector<1x9xi1> to vector<8x9xi1>
    %47 = arith.select %46, %44, %11 : vector<8x9xi1>, vector<8x9xf32>
    %c4_i32_12 = arith.constant 4 : i32
    %48 = vector.broadcast %c4_i32_12 : i32 to vector<1x9xi32>
    %49 = arith.cmpi sge, %6, %48 : vector<1x9xi32>
    %c7_i32 = arith.constant 7 : i32
    %50 = vector.broadcast %c7_i32 : i32 to vector<1x9xi32>
    %51 = arith.cmpi slt, %6, %50 : vector<1x9xi32>
    %52 = arith.andi %49, %51 : vector<1x9xi1>
    %cst_13 = arith.constant 0xFF800000 : f32
    %53 = vector.shape_cast %52 : vector<1x9xi1> to vector<1x9xi1>
    %54 = vector.broadcast %53 : vector<1x9xi1> to vector<8x9xi1>
    %55 = vector.broadcast %cst_13 : f32 to vector<8x9xf32>
    %56 = arith.select %54, %5, %55 : vector<8x9xi1>, vector<8x9xf32>
    %cst_14 = arith.constant dense<0xFF800000> : vector<8xf32>
    %57 = vector.multi_reduction <maximumf>, %56, %cst_14 [1] : vector<8x9xf32> to vector<8xf32>
    %58 = vector.shape_cast %57 : vector<8xf32> to vector<8x1xf32>
    %59 = vector.broadcast %58 : vector<8x1xf32> to vector<8x9xf32>
    %60 = arith.subf %5, %59 : vector<8x9xf32>
    %cst_15 = arith.constant 0.000000e+00 : f32
    %61 = vector.shape_cast %52 : vector<1x9xi1> to vector<1x9xi1>
    %62 = vector.broadcast %61 : vector<1x9xi1> to vector<8x9xi1>
    %63 = vector.broadcast %cst_15 : f32 to vector<8x9xf32>
    %64 = arith.select %62, %60, %63 : vector<8x9xi1>, vector<8x9xf32>
    %65 = math.exp %64 : vector<8x9xf32>
    %cst_16 = arith.constant 0.000000e+00 : f32
    %66 = vector.shape_cast %52 : vector<1x9xi1> to vector<1x9xi1>
    %67 = vector.broadcast %66 : vector<1x9xi1> to vector<8x9xi1>
    %68 = vector.broadcast %cst_16 : f32 to vector<8x9xf32>
    %69 = arith.select %67, %65, %68 : vector<8x9xi1>, vector<8x9xf32>
    %cst_17 = arith.constant dense<0.000000e+00> : vector<8xf32>
    %70 = vector.multi_reduction <add>, %69, %cst_17 [1] : vector<8x9xf32> to vector<8xf32>
    %71 = vector.shape_cast %70 : vector<8xf32> to vector<8x1xf32>
    %72 = tpu.reciprocal %71 : vector<8x1xf32> -> vector<8x1xf32>
    %73 = vector.broadcast %72 : vector<8x1xf32> to vector<8x9xf32>
    %74 = arith.mulf %69, %73 : vector<8x9xf32>
    %cst_18 = arith.constant 1.000000e+00 : f32
    %75 = vector.broadcast %cst_18 : f32 to vector<8x1xf32>
    %76 = arith.minimumf %13, %75 : vector<8x1xf32>
    %77 = vector.broadcast %76 : vector<8x1xf32> to vector<8x9xf32>
    %78 = arith.mulf %74, %77 : vector<8x9xf32>
    %79 = vector.shape_cast %52 : vector<1x9xi1> to vector<1x9xi1>
    %80 = vector.broadcast %79 : vector<1x9xi1> to vector<8x9xi1>
    %81 = arith.select %80, %78, %47 : vector<8x9xi1>, vector<8x9xf32>
    %82 = vector.extract_strided_slice %81 {offsets = [0, 6], sizes = [8, 1], strides = [1, 1]} : vector<8x9xf32> to vector<8x1xf32>
    %c7_i32_19 = arith.constant 7 : i32
    %83 = vector.broadcast %c7_i32_19 : i32 to vector<1x9xi32>
    %84 = arith.cmpi sge, %6, %83 : vector<1x9xi32>
    %c9_i32 = arith.constant 9 : i32
    %85 = vector.broadcast %c9_i32 : i32 to vector<1x9xi32>
    %86 = arith.cmpi slt, %6, %85 : vector<1x9xi32>
    %87 = arith.andi %84, %86 : vector<1x9xi1>
    %cst_20 = arith.constant 0xFF800000 : f32
    %88 = vector.shape_cast %87 : vector<1x9xi1> to vector<1x9xi1>
    %89 = vector.broadcast %88 : vector<1x9xi1> to vector<8x9xi1>
    %90 = vector.broadcast %cst_20 : f32 to vector<8x9xf32>
    %91 = arith.select %89, %5, %90 : vector<8x9xi1>, vector<8x9xf32>
    %cst_21 = arith.constant dense<0xFF800000> : vector<8xf32>
    %92 = vector.multi_reduction <maximumf>, %91, %cst_21 [1] : vector<8x9xf32> to vector<8xf32>
    %93 = vector.shape_cast %92 : vector<8xf32> to vector<8x1xf32>
    %94 = vector.broadcast %93 : vector<8x1xf32> to vector<8x9xf32>
    %95 = arith.subf %5, %94 : vector<8x9xf32>
    %cst_22 = arith.constant 0.000000e+00 : f32
    %96 = vector.shape_cast %87 : vector<1x9xi1> to vector<1x9xi1>
    %97 = vector.broadcast %96 : vector<1x9xi1> to vector<8x9xi1>
    %98 = vector.broadcast %cst_22 : f32 to vector<8x9xf32>
    %99 = arith.select %97, %95, %98 : vector<8x9xi1>, vector<8x9xf32>
    %100 = math.exp %99 : vector<8x9xf32>
    %cst_23 = arith.constant 0.000000e+00 : f32
    %101 = vector.shape_cast %87 : vector<1x9xi1> to vector<1x9xi1>
    %102 = vector.broadcast %101 : vector<1x9xi1> to vector<8x9xi1>
    %103 = vector.broadcast %cst_23 : f32 to vector<8x9xf32>
    %104 = arith.select %102, %100, %103 : vector<8x9xi1>, vector<8x9xf32>
    %cst_24 = arith.constant dense<0.000000e+00> : vector<8xf32>
    %105 = vector.multi_reduction <add>, %104, %cst_24 [1] : vector<8x9xf32> to vector<8xf32>
    %106 = vector.shape_cast %105 : vector<8xf32> to vector<8x1xf32>
    %107 = tpu.reciprocal %106 : vector<8x1xf32> -> vector<8x1xf32>
    %108 = vector.broadcast %107 : vector<8x1xf32> to vector<8x9xf32>
    %109 = arith.mulf %104, %108 : vector<8x9xf32>
    %110 = arith.addf %12, %82 : vector<8x1xf32>
    %cst_25 = arith.constant 1.000000e+00 : f32
    %111 = vector.broadcast %cst_25 : f32 to vector<8x1xf32>
    %112 = arith.minimumf %110, %111 : vector<8x1xf32>
    %113 = vector.broadcast %112 : vector<8x1xf32> to vector<8x9xf32>
    %114 = arith.mulf %109, %113 : vector<8x9xf32>
    %115 = vector.shape_cast %87 : vector<1x9xi1> to vector<1x9xi1>
    %116 = vector.broadcast %115 : vector<1x9xi1> to vector<8x9xi1>
    %117 = arith.select %116, %114, %81 : vector<8x9xi1>, vector<8x9xf32>
    %c0_26 = arith.constant 0 : index
    %c0_27 = arith.constant 0 : index
    %118 = vector.load %arg4[%c0_26, %c0_27] : memref<8x9xf32, #tpu.memory_space<vmem>>, vector<8x9xf32>
    tpu.vector_store %arg4[%c0_26, %c0_27], %117 {strides = array<i32>} : memref<8x9xf32, #tpu.memory_space<vmem>>, vector<8x9xf32>,
    return
  }
  func.func @transform_0(%arg0: i32) -> (i32, i32) {
    %c0_i32 = arith.constant 0 : i32
    %c0_i32_0 = arith.constant 0 : i32
    return %arg0, %c0_i32 : i32, i32
  }
  func.func @transform_1(%arg0: i32) -> (i32, i32) {
    %c0_i32 = arith.constant 0 : i32
    %c0_i32_0 = arith.constant 0 : i32
    %c0_i32_1 = arith.constant 0 : i32
    return %c0_i32, %c0_i32_0 : i32, i32
  }
  func.func @transform_2(%arg0: i32) -> (i32, i32) {
    %c0_i32 = arith.constant 0 : i32
    %c0_i32_0 = arith.constant 0 : i32
    %c0_i32_1 = arith.constant 0 : i32
    return %c0_i32, %c0_i32_0 : i32, i32
  }
  func.func @transform_3(%arg0: i32) -> (i32, i32) {
    %c0_i32 = arith.constant 0 : i32
    %c0_i32_0 = arith.constant 0 : i32
    return %arg0, %c0_i32 : i32, i32
  }
}

</mosaic_0001>

<llo_original>
// kernel: tpu_custom_call.1
$region0: #{tpu_custom_call.1}
  #allocation0 [shape = 'u32[]', space=smem, size = 0x4, offset = 0x4, fixed_abs, tag = 'smem constant byte address 0x4 - core index']
  #allocation1 [shape = 'u32[144,128]{1,0:T(1,128)}', space=vmem, size = 0x12000, scoped, tag = 'internal scratch']
  %s0 = inlined_call_operand.vmem [shape: f32[16,32], index: 0, kind: input, shape index: {}]
  %s1 = inlined_call_operand.vmem [shape: f32[32,9], index: 1, kind: input, shape index: {}]
  %s2 = inlined_call_operand.vmem [shape: f32[1,9], index: 2, kind: input, shape index: {}]
  %s3 = inlined_call_operand.hbm [shape: f32[16,9], index: 3, kind: output, shape index: {}]
  %s4 = sld [smem:[#allocation0]]
  $region45: #{tpu_custom_call.1} parent=0
    _
  %s6 = ssub.s32 1, %s4
  %s7 = scalar_select 0, %s6, %s4
  $region1: #{tpu_custom_call.1} parent=0
    #allocation2 [shape = 'u8[8192]{0}', space=vmem, size = 0x2000, scoped, tag = 'output window, operand 0']
    #allocation3 [shape = 's32[2]{0}', space=sflag, size = 0x8, scoped, tag = 'scoped memory for tpu_custom_call.1']
    %8 = vsyncpa [#allocation3], 0
    %s9 = scalar_lea.sflag [#allocation3], 1
    %10 = vsyncpa %s9, 0
    loop: start=0, step=1, limit=4
    $region2: #{tpu_custom_call.1} parent=1 // loop_pre_header
      _
    $region3: #{tpu_custom_call.1} parent=1 // loop_header
      %s12 = sphi 0, %s16
      %p13 = scmp.ge.s32.totalorder %s12, 4
      %s22 = sphi 0, %s24
      %s25 = sphi 0, %s22
      %s26 = sphi 0, %s25
      %s42 = sphi 0, %s26
      %s46 = sphi 0, %s46
      %s48 = sphi 0, %s46
      %s49 = sphi 0, %s48
      %s63 = sphi 0, %s49
      %s67 = sphi 0, %s67
      %s69 = sphi 0, %s67
      %s70 = sphi 0, %s69
      %s84 = sphi 0, %s70
      %s90 = sphi 0, %s92
      %s93 = sphi 0, %s90
      %s94 = sphi 0, %s93
      %s110 = sphi 0, %s94
    $region4: #{tpu_custom_call.1} parent=1 // loop_header_branch
      %15 = sbr.rel (%p13) target = $region8
    $region5: #{tpu_custom_call.1} parent=1 // loop_body
      %s17 = ssub.s32 %s12, 1
      %s18 = ssub.s32 %s12, 2
      %s19 = sadd.s32 %s12, 1
      %s20 = ssub.s32 %s12, %s19
      %p21 = scmp.eq.s32.totalorder %s20, 0
      %s23 = sadd.s32 %s22, 1
      %s24 = scalar_select %p21, %s22, %s23
      %p27 = pneg %p21
      %p28 = scmp.eq.s32.totalorder %s12, 1
      %p29 = por %p27, %p28
      %p30 = scmp.ne.s32.totalorder %s22, %s25
      %p31 = scmp.eq.s32.totalorder %s12, 0
      %p32 = por %p30, %p31
      %p33 = scmp.ne.s32.totalorder %s22, %s25
      %p34 = scmp.eq.s32.totalorder %s17, 1
      %p35 = por %p33, %p34
      %p36 = scmp.ne.s32.totalorder %s25, %s26
      %p37 = scmp.eq.s32.totalorder %s17, 0
      %p38 = por %p36, %p37
      %p39 = scmp.ne.s32.totalorder %s25, %s26
      %p40 = scmp.eq.s32.totalorder %s18, 1
      %p41 = por %p39, %p40
      %p43 = scmp.ne.s32.totalorder %s26, %s42
      %p44 = scmp.eq.s32.totalorder %s18, 0
      %p45 = por %p43, %p44
      %s47 = sadd.s32 %s46, 1
      %p50 = scmp.eq.s32.totalorder %s12, 1
      %p51 = scmp.ne.s32.totalorder %s46, %s48
      %p52 = scmp.eq.s32.totalorder %s12, 0
      %p53 = por %p51, %p52
      %p54 = scmp.ne.s32.totalorder %s46, %s48
      %p55 = scmp.eq.s32.totalorder %s17, 1
      %p56 = por %p54, %p55
      %p57 = scmp.ne.s32.totalorder %s48, %s49
      %p58 = scmp.eq.s32.totalorder %s17, 0
      %p59 = por %p57, %p58
      %p60 = scmp.ne.s32.totalorder %s48, %s49
      %p61 = scmp.eq.s32.totalorder %s18, 1
      %p62 = por %p60, %p61
      %p64 = scmp.ne.s32.totalorder %s49, %s63
      %p65 = scmp.eq.s32.totalorder %s18, 0
      %p66 = por %p64, %p65
      %s68 = sadd.s32 %s67, 1
      %p71 = scmp.eq.s32.totalorder %s12, 1
      %p72 = scmp.ne.s32.totalorder %s67, %s69
      %p73 = scmp.eq.s32.totalorder %s12, 0
      %p74 = por %p72, %p73
      %p75 = scmp.ne.s32.totalorder %s67, %s69
      %p76 = scmp.eq.s32.totalorder %s17, 1
      %p77 = por %p75, %p76
      %p78 = scmp.ne.s32.totalorder %s69, %s70
      %p79 = scmp.eq.s32.totalorder %s17, 0
      %p80 = por %p78, %p79
      %p81 = scmp.ne.s32.totalorder %s69, %s70
      %p82 = scmp.eq.s32.totalorder %s18, 1
      %p83 = por %p81, %p82
      %p85 = scmp.ne.s32.totalorder %s70, %s84
      %p86 = scmp.eq.s32.totalorder %s18, 0
      %p87 = por %p85, %p86
      %s88 = ssub.s32 %s12, %s19
      %p89 = scmp.eq.s32.totalorder %s88, 0
      %s91 = sadd.s32 %s90, 1
      %s92 = scalar_select %p89, %s90, %s91
      %p95 = pneg %p89
      %p96 = scmp.eq.s32.totalorder %s12, 1
      %p97 = por %p95, %p96
      %p98 = scmp.ne.s32.totalorder %s90, %s93
      %p99 = scmp.eq.s32.totalorder %s12, 0
      %p100 = por %p98, %p99
      %p101 = scmp.ne.s32.totalorder %s90, %s93
      %p102 = scmp.eq.s32.totalorder %s17, 1
      %p103 = por %p101, %p102
      %p104 = scmp.ne.s32.totalorder %s93, %s94
      %p105 = scmp.eq.s32.totalorder %s17, 0
      %p106 = por %p104, %p105
      %p107 = scmp.ne.s32.totalorder %s93, %s94
      %p108 = scmp.eq.s32.totalorder %s18, 1
      %p109 = por %p107, %p108
      %p111 = scmp.ne.s32.totalorder %s94, %s110
      %p112 = scmp.eq.s32.totalorder %s18, 0
      %p113 = por %p111, %p112
      %p114 = scmp.le.s32.totalorder 1, %s12
      %p115 = scmp.lt.s32.totalorder %s12, 3
      %p116 = pnand %p114, %p115
      %p117 = pneg %p116
      // Predicated region
      $region9: #{tpu_custom_call.1} parent=5 // pred_check
        _
      $region10: #{tpu_custom_call.1} parent=5 // pred_check_branch
        %119 = sbr.rel (%p116) target = $region12
      $region11: #{tpu_custom_call.1} parent=5 // pred_region
        %s120 = ssub.s32 %s12, 1
        // Predicated region
        $region13: #{tpu_custom_call.1} parent=11 // pred_check
          %p121 = pneg %p59
        $region14: #{tpu_custom_call.1} parent=11 // pred_check_branch
          %123 = sbr.rel (%p121) target = $region16
        $region15: #{tpu_custom_call.1} parent=11 // pred_region
          _
        $region16: #{tpu_custom_call.1} parent=11 // pred_fallthru
          _
        // Predicated region
        $region17: #{tpu_custom_call.1} parent=11 // pred_check
          %p124 = pneg %p80
        $region18: #{tpu_custom_call.1} parent=11 // pred_check_branch
          %126 = sbr.rel (%p124) target = $region20
        $region19: #{tpu_custom_call.1} parent=11 // pred_region
          _
        $region20: #{tpu_custom_call.1} parent=11 // pred_fallthru
          _
      $region12: #{tpu_custom_call.1} parent=5 // pred_fallthru
        _
      %p127 = scmp.lt.s32.totalorder %s12, 2
      // Predicated region
      $region21: #{tpu_custom_call.1} parent=5 // pred_check
        %p128 = pneg %p127
      $region22: #{tpu_custom_call.1} parent=5 // pred_check_branch
        %130 = sbr.rel (%p128) target = $region24
      $region23: #{tpu_custom_call.1} parent=5 // pred_region
        // Predicated region
        $region25: #{tpu_custom_call.1} parent=23 // pred_check
          %p131 = pneg %p32
        $region26: #{tpu_custom_call.1} parent=23 // pred_check_branch
          %133 = sbr.rel (%p131) target = $region28
        $region27: #{tpu_custom_call.1} parent=23 // pred_region
          %p134 = scmp.lt.s32.totalorder %s12, 1
          %s135 = scalar_select %p134, %s12, 1
          %s136 = smul.addr %s135, 8
          %s137 = scalar_lea.vmem %s0, %s136
        $region28: #{tpu_custom_call.1} parent=23 // pred_fallthru
          _
      $region24: #{tpu_custom_call.1} parent=5 // pred_fallthru
        _
      %p138 = scmp.le.s32.totalorder 1, %s12
      %p139 = scmp.lt.s32.totalorder %s12, 3
      %p140 = pnand %p138, %p139
      %p141 = pneg %p140
      // Predicated region
      $region29: #{tpu_custom_call.1} parent=5 // pred_check
        _
      $region30: #{tpu_custom_call.1} parent=5 // pred_check_branch
        %143 = sbr.rel (%p140) target = $region32
      $region31: #{tpu_custom_call.1} parent=5 // pred_region
        %s144 = ssub.s32 %s12, 1
        %p145 = scmp.lt.s32.totalorder %s17, 1
        %s146 = scalar_select %p145, %s17, 1
        %s147 = smul.addr %s146, 8
        %s148 = scalar_lea.vmem %s0, %s147
        %p149 = pneg %p38
        %p150 = pneg %p35
        %p151 = pneg %p59
        %p152 = pneg %p56
        %p153 = pneg %p80
        %p154 = pneg %p77
        %p155 = pneg %p106
        %p156 = pneg %p103
        %s157 = sand.u32 %s93, 1
        %s158 = scalar_lea.sflag [#allocation3], %s157
        %s159 = sand.u32 %s93, 1
        %s160 = smul.addr %s159, 8
        %s161 = scalar_lea.vmem [#allocation2], %s160
        %p162 = scmp.lt.s32.totalorder %s17, 1
        %s163 = scalar_select %p162, %s17, 1
        %s164 = smul.addr %s163, 8
        %s165 = scalar_lea.vmem %s0, %s164
        %v166 = vld [vmem:[%s165] sm:$0xff]
        %v167 = vld [vmem:[%s1] sm:$0xff]
        %v168 = vld [vmem:[%s1 + $0x8] sm:$0xff]
        %v169 = vld [vmem:[%s1 + $0x10] sm:$0xff]
        %v170 = vld [vmem:[%s1 + $0x18] sm:$0xff]
        %v171 = vld [vmem:[%s2] sm:$0x1]
        %v173 = vlaneseq
        %v174 = vshrl.u32 %v173, 7
        %v175 = vsub.s32 0, %v174
        %v176 = vrot.slane %v171, %v175
        %vm178 = vcmask 261120
        %v180 = vsel %vm178, %v166, 0
        %182 = vmatprep.subr.mxu0 0.0
        %183 = vmatpush1.msra.mxu0 0.0
        %184 = vmatprep.subr.mxu0 0.0
        %185 = vmatpush1.msra.mxu0 0.0
        %186 = vmatprep.subr.mxu0 0.0
        %187 = vmatpush1.msra.mxu0 0.0
        %188 = vmatprep.subr.mxu0 0.0
        %189 = vmatpush1.msra.mxu0 0.0
        %190 = vmatprep.subr.mxu0 0.0
        %191 = vmatpush1.msra.mxu0 0.0
        %192 = vmatprep.subr.mxu0 0.0
        %193 = vmatpush1.msra.mxu0 0.0
        %194 = vmatprep.subr.mxu0 0.0
        %195 = vmatpush1.msra.mxu0 0.0
        %196 = vmatprep.subr.mxu0 0.0
        %197 = vmatpush1.msra.mxu0 0.0
        %198 = vmatprep.subr.mxu0 0.0
        %199 = vmatpush1.msra.mxu0 0.0
        %200 = vmatprep.subr.mxu0 0.0
        %201 = vmatpush1.msra.mxu0 0.0
        %202 = vmatprep.subr.mxu0 0.0
        %203 = vmatpush1.msra.mxu0 0.0
        %204 = vmatprep.subr.mxu0 0.0
        %205 = vmatpush1.msra.mxu0 0.0
        %206 = vmatprep.subr.mxu0 0.0
        %207 = vmatpush1.msra.mxu0 %v170
        %208 = vmatprep.subr.mxu0 0.0
        %209 = vmatpush1.msra.mxu0 %v169
        %210 = vmatprep.subr.mxu0 0.0
        %211 = vmatpush1.msra.mxu0 %v168
        %212 = vmatprep.subr.mxu0 0.0
        %213 = vmatpush1.msra.mxu0 %v167
        %214 = vmatprep.subr.mxu0 0.0
        %215 = vmatpush2.msra.mxu0 0.0
        %216 = vmatprep.subr.mxu0 0.0
        %217 = vmatpush2.msra.mxu0 0.0
        %218 = vmatprep.subr.mxu0 0.0
        %219 = vmatpush2.msra.mxu0 0.0
        %220 = vmatprep.subr.mxu0 0.0
        %221 = vmatpush2.msra.mxu0 0.0
        %222 = vmatprep.subr.mxu0 0.0
        %223 = vmatpush2.msra.mxu0 0.0
        %224 = vmatprep.subr.mxu0 0.0
        %225 = vmatpush2.msra.mxu0 0.0
        %226 = vmatprep.subr.mxu0 0.0
        %227 = vmatpush2.msra.mxu0 0.0
        %228 = vmatprep.subr.mxu0 0.0
        %229 = vmatpush2.msra.mxu0 0.0
        %230 = vmatprep.subr.mxu0 0.0
        %231 = vmatpush2.msra.mxu0 0.0
        %232 = vmatprep.subr.mxu0 0.0
        %233 = vmatpush2.msra.mxu0 0.0
        %234 = vmatprep.subr.mxu0 0.0
        %235 = vmatpush2.msra.mxu0 0.0
        %236 = vmatprep.subr.mxu0 0.0
        %237 = vmatpush2.msra.mxu0 0.0
        %238 = vmatprep.subr.mxu0 0.0
        %239 = vmatpush2.msra.mxu0 0.0
        %240 = vmatprep.subr.mxu0 0.0
        %241 = vmatpush2.msra.mxu0 0.0
        %242 = vmatprep.subr.mxu0 0.0
        %243 = vmatpush2.msra.mxu0 0.0
        %244 = vmatprep.subr.mxu0 0.0
        %245 = vmatpush2.msra.mxu0 0.0
        %246 = vmatprep.mubr.f32.mxu0 0.0
        %247 = vmatmul.mubr.f32.gmra.mxu0 %v180
        %v248 = vpop.f32.mrf.mxu0
        %v249 = vadd.f32 %v176, %v248
        %v250 = vpop.f32.mrf.mxu0
        %251 = vdwg.mxu0
        %v252 = vlaneseq
        %v253 = vand.u32 %v252, 127
        %v254 = vxor.u32 %v249, 2147483648
        %v255 = vmul.f32 %v254, 1.442695
        %v256 = vpow.pop %v255
        %v257 = vadd.f32 %v256, 1.0
        %v258 = vrcp.pop %v257
        %v259 = vmul.f32 1.0, %v258
        %vm260 = vcmp.ge.s32.totalorder %v253, 2
        %vm261 = vcmp.lt.s32.totalorder %v253, 4
        %vm262 = vmand %vm260, %vm261
        %v263 = vsel %vm262, 1, 0
        %vm264 = vcmp.eq.s32.totalorder %v263, 1
        %v265 = vsel %vm264, %v249, -inf
        %vm266 = vcmask 72704
        %v267 = vsel %vm266, %v265, -inf
        %268 = vmax.xlane.f32.xlu0 %v267
        %v269 = vpop.xlane.xlu0 %268
        %v270 = vsub.f32 %v249, %v269
        %v271 = vsel %vm264, %v270, 0.0
        %v272 = vmul.f32 %v271, 1.442695
        %v273 = vpow.pop %v272
        %v274 = vsel %vm264, %v273, 0.0
        %v275 = vsel %vm266, %v274, 0.0
        %276 = vadd.xlane.f32.xlu0 %v275
        %v277 = vpop.xlane.xlu0 %276
        %v278 = vrcp.pop %v277
        %v279 = vmul.f32 %v274, %v278
        %v280 = vmin.f32 %v259, 1.0
        %282 = vset.pattern.permute.xlu0 0
        %283 = vperm.xlu0 %282, %v280
        %v284 = vpop.permute.xlu0 %283
        %v286 = vmul.f32 %v279, %v284
        %v287 = vsel %vm264, %v286, %v259
        %vm288 = vcmp.ge.s32.totalorder %v253, 4
        %vm289 = vcmp.lt.s32.totalorder %v253, 7
        %vm290 = vmand %vm288, %vm289
        %v291 = vsel %vm290, 1, 0
        %vm292 = vcmp.eq.s32.totalorder %v291, 1
        %v293 = vsel %vm292, %v249, -inf
        %v294 = vsel %vm266, %v293, -inf
        %295 = vmax.xlane.f32.xlu0 %v294
        %v296 = vpop.xlane.xlu0 %295
        %v297 = vsub.f32 %v249, %v296
        %v298 = vsel %vm292, %v297, 0.0
        %v299 = vmul.f32 %v298, 1.442695
        %v300 = vpow.pop %v299
        %v301 = vsel %vm292, %v300, 0.0
        %v302 = vsel %vm266, %v301, 0.0
        %303 = vadd.xlane.f32.xlu0 %v302
        %v304 = vpop.xlane.xlu0 %303
        %v305 = vrcp.pop %v304
        %v306 = vmul.f32 %v301, %v305
        %307 = vset.pattern.permute.xlu0 1
        %308 = vperm.xlu0 %307, %v280
        %v309 = vpop.permute.xlu0 %308
        %v311 = vmul.f32 %v306, %v309
        %v312 = vsel %vm292, %v311, %v287
        %vm313 = vcmp.ge.s32.totalorder %v253, 7
        %vm314 = vcmp.lt.s32.totalorder %v253, 9
        %vm315 = vmand %vm313, %vm314
        %v316 = vsel %vm315, 1, 0
        %vm317 = vcmp.eq.s32.totalorder %v316, 1
        %v318 = vsel %vm317, %v249, -inf
        %v319 = vsel %vm266, %v318, -inf
        %320 = vmax.xlane.f32.xlu0 %v319
        %v321 = vpop.xlane.xlu0 %320
        %v322 = vsub.f32 %v249, %v321
        %v323 = vsel %vm317, %v322, 0.0
        %v324 = vmul.f32 %v323, 1.442695
        %v325 = vpow.pop %v324
        %v326 = vsel %vm317, %v325, 0.0
        %v327 = vsel %vm266, %v326, 0.0
        %328 = vadd.xlane.f32.xlu0 %v327
        %v329 = vpop.xlane.xlu0 %328
        %v330 = vrcp.pop %v329
        %v331 = vmul.f32 %v326, %v330
        %333 = vrot.lane.b32.xlu0 %v312, 122
        %v334 = vpop.permute.xlu0 %333
        %v336 = vadd.f32 %v259, %v334
        %v337 = vmin.f32 %v336, 1.0
        %339 = vset.pattern.permute.xlu0 0
        %340 = vperm.xlu0 %339, %v337
        %v341 = vpop.permute.xlu0 %340
        %v343 = vmul.f32 %v331, %v341
        %v344 = vsel %vm317, %v343, %v312
        %345 = vst.msk [vmem:[%s161] sm:$0xff] %vm266, %v344
        %s346 = sand.u32 %s93, 1
        %s347 = scalar_lea.sflag [#allocation3], %s346
        %s348 = sand.u32 %s93, 1
        %s349 = smul.addr %s348, 8
        %s350 = scalar_lea.vmem [#allocation2], %s349
        // Predicated region
        $region33: #{tpu_custom_call.1} parent=31 // pred_check
          %p351 = pneg %p103
        $region34: #{tpu_custom_call.1} parent=31 // pred_check_branch
          %353 = sbr.rel (%p351) target = $region36
        $region35: #{tpu_custom_call.1} parent=31 // pred_region
          %s355 = ssub.s32 128, 128
          %356 = vsyncadd %s347, %s355
          %s357 = smul.addr %s17, 128
          %s358 = scalar_lea.hbm %s3, %s357
          %s360 = sshll.u32 %s350, 4
          %s361 = int_to_ptr.vmem [resolvable:$true] %s360
          %363 = dma.vmem_to_hbm [thread:$0]  %s361, 128, %s358, %s347
        $region36: #{tpu_custom_call.1} parent=31 // pred_fallthru
          _
      $region32: #{tpu_custom_call.1} parent=5 // pred_fallthru
        _
      %p364 = scmp.le.s32.totalorder 2, %s12
      // Predicated region
      $region37: #{tpu_custom_call.1} parent=5 // pred_check
        %p365 = pneg %p364
      $region38: #{tpu_custom_call.1} parent=5 // pred_check_branch
        %367 = sbr.rel (%p365) target = $region40
      $region39: #{tpu_custom_call.1} parent=5 // pred_region
        %s368 = ssub.s32 %s12, 2
        // Predicated region
        $region41: #{tpu_custom_call.1} parent=39 // pred_check
          %p369 = pneg %p109
        $region42: #{tpu_custom_call.1} parent=39 // pred_check_branch
          %371 = sbr.rel (%p369) target = $region44
        $region43: #{tpu_custom_call.1} parent=39 // pred_region
          %s372 = sand.u32 %s94, 1
          %s373 = scalar_lea.sflag [#allocation3], %s372
          %s374 = sand.u32 %s94, 1
          %s375 = smul.addr %s374, 8
          %s376 = scalar_lea.vmem [#allocation2], %s375
          %377 = dma.done %s373, 128
        $region44: #{tpu_custom_call.1} parent=39 // pred_fallthru
          _
      $region40: #{tpu_custom_call.1} parent=5 // pred_fallthru
        _
    $region6: #{tpu_custom_call.1} parent=1 // loop_footer
      %s16 = sadd.s32 1, %s12
    $region7: #{tpu_custom_call.1} parent=1 // loop_footer_branch
      %11 = sbr.rel target = $region3
    $region8: #{tpu_custom_call.1} parent=1 // loop_exit
      _
    %378 = vsyncpa [#allocation3], 1
    %s379 = scalar_lea.sflag [#allocation3], 1
    %380 = vsyncpa %s379, 1

</llo_original>
